<compile_context>
chip_gen: v7x
topology: tpu7x:2x2x1
jax: 0.10.0
libtpu: 0.0.40
codegen_flags: <defaults>
</compile_context>

<pallas_src>
import functools

import jax
import jax.numpy as jnp
import numpy as np
from jax.experimental import pallas as pl
from jax.experimental.pallas import tpu as pltpu


def _round_up(x: int, m: int) -> int:
    return ((x + m - 1) // m) * m


def _vmem_capacity_bytes() -> int:
    """Per-core VMEM capacity; conservative 64 MiB (v7x) if query fails."""
    try:
        cap = int(pltpu.get_tpu_info().vmem_capacity_bytes)
        return min(cap, 128 * 1024 * 1024)
    except Exception:
        return 64 * 1024 * 1024


def _vmem_need(tm: int, tn: int, n_fft: int, elt: int) -> int:
    # Pallas double-buffers every BlockSpec'd input/output.
    return 2 * (tm * n_fft + n_fft * tn) * elt + 2 * tm * tn * 4


def _select_tiles(M: int, n_fft: int, n_cols: int, elt: int, budget: int):
    """Pick (tm, tn) minimizing modeled kernel HBM traffic under a VMEM cap.

    Traffic model: the frames tile is resident across the (inner) bin sweep,
    so frames are read once; the basis is re-streamed once per M-tile unless
    there is only one bin tile (block index constant -> fetched once total).
    A ~0.35us/grid-step overhead is folded in as byte-equivalents.
    """
    tn_cands = [d for d in range(128, n_cols + 1, 128) if n_cols % d == 0]
    m_cap = _round_up(M, 8)
    tm_cands = sorted({min(t, m_cap) for t in (1024, 512, 256, 128, 64, 32, 16, 8)}
                      | {m_cap}, reverse=True)
    best = None
    basis_bytes = n_fft * n_cols * elt
    for tm in tm_cands:
        n_mt = -(-M // tm)
        m_pad = n_mt * tm
        for tn in tn_cands:
            n_bt = n_cols // tn
            need = _vmem_need(tm, tn, n_fft, elt)
            basis_traffic = basis_bytes if n_bt == 1 else n_mt * basis_bytes
            traffic = (basis_traffic
                       + m_pad * n_fft * elt          # frames read once
                       + m_pad * n_cols * 4           # f32 output write
                       + n_mt * n_bt * 400_000)       # per-step overhead
            key = (0 if need <= budget else 1, traffic, need)
            if best is None or key < best[0]:
                best = (key, tm, tn)
    _, tm, tn = best
    return tm, tn


def _stft_matmul_kernel(frames_ref, basis_ref, out_ref):
    # Hot path: windowed DFT as one bf16 matmul with f32 accumulation (MXU).
    out_ref[...] = jnp.dot(
        frames_ref[...], basis_ref[...], preferred_element_type=jnp.float32
    )


@functools.lru_cache(maxsize=None)
def _dft_basis(n_fft: int, nb_pad: int, dtype_name: str):
    """Host-precomputed (float64) windowed DFT basis, shape (n_fft, 2*nb_pad).

    Columns [0, n_bins)             -> win * cos(2*pi*k*b/n_fft)   (real)
    Columns [nb_pad, nb_pad+n_bins) -> -win * sin(2*pi*k*b/n_fft)  (imag)
    Remaining columns are zero padding (lane alignment / tn divisibility).
    Phase uses exact integer (k*b mod n_fft) so there is no argument-reduction
    error even at n_fft=4096.
    """
    n_bins = n_fft // 2 + 1
    k = np.arange(n_fft)
    # periodic hann window, same as torch.hann_window(n_fft)
    win = 0.5 * (1.0 - np.cos(2.0 * np.pi * k / n_fft))
    b = np.arange(n_bins)
    phase = (np.outer(k, b) % n_fft).astype(np.float64)
    ang = (2.0 * np.pi / n_fft) * phase
    basis = np.zeros((n_fft, 2 * nb_pad), dtype=np.float64)
    basis[:, :n_bins] = win[:, None] * np.cos(ang)
    basis[:, nb_pad:nb_pad + n_bins] = -win[:, None] * np.sin(ang)
    return jnp.asarray(basis, dtype=jnp.dtype(dtype_name))


@functools.partial(jax.jit, static_argnames=("n_fft", "tm", "tn", "vmem_limit"))
def _stft_core(x, basis, *, n_fft: int, tm: int, tn: int, vmem_limit: int):
    nb_samples, nb_channels, nb_timesteps = x.shape
    hop = n_fft // 4                      # torch.stft default hop_length
    n_bins = n_fft // 2 + 1
    nb_pad = _round_up(n_bins, 256)
    n_cols = 2 * nb_pad                   # == basis.shape[1]
    compute_dtype = basis.dtype
    rows = nb_samples * nb_channels

    # ---- glue (plain JAX): reshape, reflect pad (center=True) ----
    xf = x.reshape(rows, nb_timesteps).astype(compute_dtype)
    pad = n_fft // 2
    xp = jnp.pad(xf, ((0, 0), (pad, pad)), mode="reflect")
    n_frames = 1 + nb_timesteps // hop

    # ---- frame matrix WITHOUT a gather (hop divides n_fft exactly) ----
    # frame f = xp[f*hop : f*hop + n_fft] = chunks[f] | chunks[f+1] |
    #           chunks[f+2] | chunks[f+3]   (chunk size = hop)
    n_chunks = n_frames + 3
    xc = xp[:, :n_chunks * hop].reshape(rows, n_chunks, hop)
    frames = jnp.concatenate(
        [xc[:, s:s + n_frames, :] for s in range(4)], axis=2
    ).reshape(rows * n_frames, n_fft)

    M = rows * n_frames
    M_pad = _round_up(M, tm)
    frames = jnp.pad(frames, ((0, M_pad - M), (0, 0)))   # zero rows, sliced off

    # ---- Pallas kernel: tiled windowed-DFT matmul ----
    grid = (M_pad // tm, n_cols // tn)    # bin axis innermost -> frames tile
                                          # stays resident across the j sweep;
                                          # if n_cols//tn == 1 the basis is
                                          # fetched from HBM exactly once.
    out = pl.pallas_call(
        _stft_matmul_kernel,
        out_shape=jax.ShapeDtypeStruct((M_pad, n_cols), jnp.float32),
        grid_spec=pltpu.PrefetchScalarGridSpec(
            num_scalar_prefetch=0,
            grid=grid,
            in_specs=[
                pl.BlockSpec((tm, n_fft), lambda i, j: (i, 0)),
                pl.BlockSpec((n_fft, tn), lambda i, j: (0, j)),
            ],
            out_specs=pl.BlockSpec((tm, tn), lambda i, j: (i, j)),
        ),
        compiler_params=pltpu.CompilerParams(
            dimension_semantics=("parallel", "parallel"),
            vmem_limit_bytes=vmem_limit,
        ),
    )(frames, basis)

    # ---- epilogue: (M_pad, 2*nb_pad) -> (S, C, n_bins, n_frames, 2) ----
    # The slice + stack + transpose fuse into (roughly) one XLA relayout pass.
    re = out[:M, :n_bins]
    im = out[:M, nb_pad:nb_pad + n_bins]
    spec = jnp.stack([re, im], axis=-1)
    spec = spec.reshape(nb_samples, nb_channels, n_frames, n_bins, 2)
    return jnp.transpose(spec, (0, 1, 3, 2, 4))    # (S, C, B, F, 2)


def stft_forward(x, *, n_fft: int = 4096, compute_dtype=jnp.bfloat16,
                 tm: int | None = None, tn: int | None = None):
    """Replicates STFT.forward of the PyTorch module.

    compute_dtype=jnp.float32 gives tighter parity with torch float32 at the
    cost of ~2x kernel HBM traffic (the op is HBM-bound, not MXU-bound).
    tm/tn may be overridden (mainly for testing); by default they are chosen
    per-generation from the VMEM capacity.
    """
    nb_samples, nb_channels, nb_timesteps = x.shape
    hop = n_fft // 4
    n_bins = n_fft // 2 + 1
    nb_pad = _round_up(n_bins, 256)
    n_cols = 2 * nb_pad
    n_frames = 1 + nb_timesteps // hop
    M = nb_samples * nb_channels * n_frames
    elt = jnp.dtype(compute_dtype).itemsize

    cap = _vmem_capacity_bytes()
    budget = int(0.72 * cap)
    if tm is None or tn is None:
        tm_auto, tn_auto = _select_tiles(M, n_fft, n_cols, elt, budget)
        tm = tm if tm is not None else tm_auto
        tn = tn if tn is not None else tn_auto
    assert tm % 8 == 0 and tm > 0, "tm must be a positive multiple of 8"
    assert n_cols % tn == 0 and tn % 128 == 0, "tn must divide n_cols, mult of 128"

    need = _vmem_need(tm, tn, n_fft, elt)
    vmem_limit = int(max(32 * 1024 * 1024,
                         min(cap - 2 * 1024 * 1024, need + 16 * 1024 * 1024)))

    basis = _dft_basis(n_fft, nb_pad, jnp.dtype(compute_dtype).name)
    return _stft_core(x, basis, n_fft=n_fft, tm=int(tm), tn=int(tn),
                      vmem_limit=vmem_limit)


def _reference_stft(x, n_fft):
    # pure numpy (float64) reference for a sanity check
    nb_samples, nb_channels, T = x.shape
    hop = n_fft // 4
    n_bins = n_fft // 2 + 1
    xf = np.asarray(x, dtype=np.float64).reshape(nb_samples * nb_channels, T)
    pad = n_fft // 2
    xp = np.pad(xf, ((0, 0), (pad, pad)), mode="reflect")
    n_frames = 1 + (xp.shape[1] - n_fft) // hop
    k = np.arange(n_fft)
    win = 0.5 * (1.0 - np.cos(2.0 * np.pi * k / n_fft))
    out = np.zeros((xf.shape[0], n_bins, n_frames, 2), dtype=np.float64)
    for t in range(n_frames):
        seg = xp[:, t * hop:t * hop + n_fft] * win
        spec = np.fft.rfft(seg, axis=-1)
        out[:, :, t, 0] = spec.real
        out[:, :, t, 1] = spec.imag
    return out.reshape(nb_samples, nb_channels, n_bins, n_frames, 2)


if __name__ == "__main__":
    n_fft = 64          # small synthetic config (module default is 4096)
    nb_samples, nb_channels, nb_timesteps = 2, 2, 256

    key = jax.random.PRNGKey(0)
    x = jax.random.normal(key, (nb_samples, nb_channels, nb_timesteps),
                          dtype=jnp.float32)

    ref = _reference_stft(np.asarray(x), n_fft)

    # 1) auto-selected tiles (single-block grid at this tiny size)
    out = jax.block_until_ready(stft_forward(x, n_fft=n_fft))
    assert out.shape == ref.shape, (out.shape, ref.shape)
    # bf16 frames / f32 MXU accumulation -> slightly relaxed tolerances.
    np.testing.assert_allclose(np.asarray(out), ref, rtol=3e-2, atol=5e-2)

    # 2) forced small tiles to exercise a multi-tile (i, j) grid / index maps
    out2 = jax.block_until_ready(stft_forward(x, n_fft=n_fft, tm=16, tn=128))
    np.testing.assert_allclose(np.asarray(out2), ref, rtol=3e-2, atol=5e-2)

    print("KERNEL_OK")
</pallas_src>

<mosaic_0001>
module attributes {stable_mosaic.version = 11 : i64} {
  func.func @_stft_matmul_kernel(%arg0: i32, %arg1: i32, %arg2: memref<72x64xbf16, #tpu.memory_space<vmem>>, %arg3: memref<64x512xbf16, #tpu.memory_space<vmem>>, %arg4: memref<72x512xf32, #tpu.memory_space<vmem>>) attributes {dimension_semantics = [#tpu.dimension_semantics<parallel>, #tpu.dimension_semantics<parallel>], iteration_bounds = array<i64: 1, 1>, scalar_prefetch = 0 : i64, scratch_operands = 0 : i64, tpu.core_type = #tpu.core_type<tc>, window_params = [{transform_indices = @transform_0, window_bounds = array<i64: 72, 64>}, {transform_indices = @transform_1, window_bounds = array<i64: 64, 512>}, {transform_indices = @transform_2, window_bounds = array<i64: 72, 512>}]} {
    %c0 = arith.constant 0 : index
    %c0_0 = arith.constant 0 : index
    %0 = vector.load %arg2[%c0, %c0_0] : memref<72x64xbf16, #tpu.memory_space<vmem>>, vector<72x64xbf16>
    %c0_1 = arith.constant 0 : index
    %c0_2 = arith.constant 0 : index
    %1 = vector.load %arg3[%c0_1, %c0_2] : memref<64x512xbf16, #tpu.memory_space<vmem>>, vector<64x512xbf16>
    %cst = arith.constant dense<0.000000e+00> : vector<72x512xf32>
    %2 = tpu.matmul %0, %1, %cst {dimension_numbers = #tpu.dot_dimension_numbers<[1], [0], [0], [1], [0, 0, 1, 1], [], []>} : vector<72x64xbf16>, vector<64x512xbf16>, vector<72x512xf32> -> vector<72x512xf32>
    %c0_3 = arith.constant 0 : index
    %c0_4 = arith.constant 0 : index
    %3 = vector.load %arg4[%c0_3, %c0_4] : memref<72x512xf32, #tpu.memory_space<vmem>>, vector<72x512xf32>
    tpu.vector_store %arg4[%c0_3, %c0_4], %2 {strides = array<i32>} : memref<72x512xf32, #tpu.memory_space<vmem>>, vector<72x512xf32>,
    return
  }
  func.func @transform_0(%arg0: i32, %arg1: i32) -> (i32, i32) {
    %c0_i32 = arith.constant 0 : i32
    %c0_i32_0 = arith.constant 0 : i32
    return %arg0, %c0_i32 : i32, i32
  }
  func.func @transform_1(%arg0: i32, %arg1: i32) -> (i32, i32) {
    %c0_i32 = arith.constant 0 : i32
    %c0_i32_0 = arith.constant 0 : i32
    return %c0_i32, %arg1 : i32, i32
  }
  func.func @transform_2(%arg0: i32, %arg1: i32) -> (i32, i32) {
    %c0_i32 = arith.constant 0 : i32
    return %arg0, %arg1 : i32, i32
  }
}

</mosaic_0001>

<llo_original>
// kernel: _stft_core.1
$region0: #{_stft_core.1}
  #allocation0 [shape = 'u32[]', space=smem, size = 0x4, offset = 0x4, fixed_abs, tag = 'smem constant byte address 0x4 - core index']
  #allocation1 [shape = 'u32[144,128]{1,0:T(1,128)}', space=vmem, size = 0x12000, scoped, tag = 'internal scratch']
  %s0 = inlined_call_operand.vmem [shape: bf16[72,64], index: 0, kind: input, shape index: {}]
  %s1 = inlined_call_operand.vmem [shape: bf16[64,512], index: 1, kind: input, shape index: {}]
  %s2 = inlined_call_operand.vmem [shape: f32[72,512], index: 2, kind: output, shape index: {}]
  %s3 = sld [smem:[#allocation0]]
  $region18: #{_stft_core.1} parent=0
    _
  %s5 = ssub.s32 1, %s3
  %s6 = scalar_select 0, %s5, %s3
  // Predicated region
  $region2: #{_stft_core.1} parent=0 // pred_check
    _
  $region3: #{_stft_core.1} parent=0 // pred_check_branch
    %8 = sbr.rel (0) target = $region5
  $region4: #{_stft_core.1} parent=0 // pred_region
    _
  $region5: #{_stft_core.1} parent=0 // pred_fallthru
    _
  // Predicated region
  $region6: #{_stft_core.1} parent=0 // pred_check
    _
  $region7: #{_stft_core.1} parent=0 // pred_check_branch
    %10 = sbr.rel (0) target = $region9
  $region8: #{_stft_core.1} parent=0 // pred_region
    _
  $region9: #{_stft_core.1} parent=0 // pred_fallthru
    _
  %v12 = vld [vmem:[%s0] sm:$0xf]
  %v13 = vld [vmem:[%s0 + $0x4] sm:$0xf]
  %v14 = vld [vmem:[%s0 + $0x8] sm:$0xf]
  %v15 = vld [vmem:[%s0 + $0xc] sm:$0xf]
  %v16 = vld [vmem:[%s0 + $0x10] sm:$0xf]
  %v17 = vld [vmem:[%s0 + $0x14] sm:$0xf]
  %v18 = vld [vmem:[%s0 + $0x18] sm:$0xf]
  %v19 = vld [vmem:[%s0 + $0x1c] sm:$0xf]
  %v20 = vld [vmem:[%s0 + $0x20] sm:$0xf]
  %v21 = vld [vmem:[%s1] sm:$0xff]
  %v22 = vld [vmem:[%s1 + $0x8] sm:$0xff]
  %v23 = vld [vmem:[%s1 + $0x10] sm:$0xff]
  %v24 = vld [vmem:[%s1 + $0x18] sm:$0xff]
  %v25 = vld [vmem:[%s1 + $0x20] sm:$0xff]
  %v26 = vld [vmem:[%s1 + $0x28] sm:$0xff]
  %v27 = vld [vmem:[%s1 + $0x30] sm:$0xff]
  %v28 = vld [vmem:[%s1 + $0x38] sm:$0xff]
  %v29 = vld [vmem:[%s1 + $0x40] sm:$0xff]
  %v30 = vld [vmem:[%s1 + $0x48] sm:$0xff]
  %v31 = vld [vmem:[%s1 + $0x50] sm:$0xff]
  %v32 = vld [vmem:[%s1 + $0x58] sm:$0xff]
  %v33 = vld [vmem:[%s1 + $0x60] sm:$0xff]
  %v34 = vld [vmem:[%s1 + $0x68] sm:$0xff]
  %v35 = vld [vmem:[%s1 + $0x70] sm:$0xff]
  %v36 = vld [vmem:[%s1 + $0x78] sm:$0xff]
  %v46 = vunpack.c.l.b16 %v12
  %v47 = vunpack.c.l.b16 %v13
  %v48 = vunpack.c.l.b16 %v14
  %v49 = vunpack.c.l.b16 %v15
  %v50 = vunpack.c.l.b16 %v16
  %v51 = vunpack.c.l.b16 %v17
  %v52 = vunpack.c.l.b16 %v18
  %v53 = vunpack.c.l.b16 %v19
  %v54 = vunpack.c.l.b16 %v20
  %v55 = vpack.c.b16 %v47, %v46
  %v56 = vpack.c.b16 %v49, %v48
  %v57 = vpack.c.b16 %v51, %v50
  %v58 = vpack.c.b16 %v53, %v52
  %v59 = vpack.c.b16 %v54, %v54
  %v76 = vunpack.c.l.b16 %v21
  %v77 = vunpack.c.h.b16 %v21
  %v78 = vunpack.c.l.b16 %v22
  %v79 = vunpack.c.h.b16 %v22
  %v80 = vunpack.c.l.b16 %v23
  %v81 = vunpack.c.h.b16 %v23
  %v82 = vunpack.c.l.b16 %v24
  %v83 = vunpack.c.h.b16 %v24
  %v84 = vunpack.c.l.b16 %v25
  %v85 = vunpack.c.h.b16 %v25
  %v86 = vunpack.c.l.b16 %v26
  %v87 = vunpack.c.h.b16 %v26
  %v88 = vunpack.c.l.b16 %v27
  %v89 = vunpack.c.h.b16 %v27
  %v90 = vunpack.c.l.b16 %v28
  %v91 = vunpack.c.h.b16 %v28
  %v92 = vunpack.c.l.b16 %v29
  %v93 = vunpack.c.h.b16 %v29
  %v94 = vunpack.c.l.b16 %v30
  %v95 = vunpack.c.h.b16 %v30
  %v96 = vunpack.c.l.b16 %v31
  %v97 = vunpack.c.h.b16 %v31
  %v98 = vunpack.c.l.b16 %v32
  %v99 = vunpack.c.h.b16 %v32
  %v100 = vunpack.c.l.b16 %v33
  %v101 = vunpack.c.h.b16 %v33
  %v102 = vunpack.c.l.b16 %v34
  %v103 = vunpack.c.h.b16 %v34
  %v104 = vunpack.c.l.b16 %v35
  %v105 = vunpack.c.h.b16 %v35
  %v106 = vunpack.c.l.b16 %v36
  %v107 = vunpack.c.h.b16 %v36
  %v108 = vpack.c.b16 %v80, %v76
  %v109 = vpack.c.b16 %v81, %v77
  %v110 = vpack.c.b16 %v82, %v78
  %v111 = vpack.c.b16 %v83, %v79
  %v112 = vpack.c.b16 %v88, %v84
  %v113 = vpack.c.b16 %v89, %v85
  %v114 = vpack.c.b16 %v90, %v86
  %v115 = vpack.c.b16 %v91, %v87
  %v116 = vpack.c.b16 %v96, %v92
  %v117 = vpack.c.b16 %v97, %v93
  %v118 = vpack.c.b16 %v98, %v94
  %v119 = vpack.c.b16 %v99, %v95
  %v120 = vpack.c.b16 %v104, %v100
  %v121 = vpack.c.b16 %v105, %v101
  %v122 = vpack.c.b16 %v106, %v102
  %v123 = vpack.c.b16 %v107, %v103
  %vm140 = vcmask 523264
  %v142 = vsel %vm140, %v55, 0
  %v145 = vsel %vm140, %v56, 0
  %v148 = vsel %vm140, %v57, 0
  %v151 = vsel %vm140, %v58, 0
  %v154 = vsel %vm140, %v59, 0
  %156 = vmatprep.subr.bf16.mxu0 %v109
  %157 = vmatpush1.bf16.msra.mxu0 %v108
  %158 = vmatprep.subr.bf16.mxu0 %v113
  %159 = vmatpush1.bf16.msra.mxu0 %v112
  %160 = vmatprep.subr.bf16.mxu0 %v117
  %161 = vmatpush1.bf16.msra.mxu0 %v116
  %162 = vmatprep.subr.bf16.mxu0 %v121
  %163 = vmatpush1.bf16.msra.mxu0 %v120
  %164 = vmatprep.subr.bf16.mxu0 0
  %165 = vmatpush1.bf16.msra.mxu0 0
  %166 = vmatprep.subr.bf16.mxu0 0
  %167 = vmatpush1.bf16.msra.mxu0 0
  %168 = vmatprep.subr.bf16.mxu0 0
  %169 = vmatpush1.bf16.msra.mxu0 0
  %170 = vmatprep.subr.bf16.mxu0 0
  %171 = vmatpush1.bf16.msra.mxu0 0
  %172 = vmatprep.subr.bf16.mxu0 0
  %173 = vmatpush1.bf16.msra.mxu0 0
  %174 = vmatprep.subr.bf16.mxu0 0
  %175 = vmatpush1.bf16.msra.mxu0 0
  %176 = vmatprep.subr.bf16.mxu0 0
  %177 = vmatpush1.bf16.msra.mxu0 0
  %178 = vmatprep.subr.bf16.mxu0 0
  %179 = vmatpush1.bf16.msra.mxu0 0
  %180 = vmatprep.subr.bf16.mxu0 0
  %181 = vmatpush1.bf16.msra.mxu0 0
  %182 = vmatprep.subr.bf16.mxu0 0
  %183 = vmatpush1.bf16.msra.mxu0 0
  %184 = vmatprep.subr.bf16.mxu0 0
  %185 = vmatpush1.bf16.msra.mxu0 0
  %186 = vmatprep.subr.bf16.mxu0 0
  %187 = vmatpush1.bf16.msra.mxu0 0
  %188 = vmatprep.mubr.bf16.mxu0 0
  %189 = vmatmul.mubr.bf16.gmra.mrb[0].mxu0 %v142
  %v190 = vpop.f32.mrb[0].mxu0
  %v191 = vadd.f32 0.0, %v190
  %v192 = vpop.f32.mrb[0].mxu0
  %v193 = vadd.f32 0.0, %v192
  %v194 = vpop.f32.mrb[0].mxu0
  %v195 = vadd.f32 0.0, %v194
  %v196 = vpop.f32.mrb[0].mxu0
  %v197 = vadd.f32 0.0, %v196
  %198 = vmatprep.mubr.bf16.mxu0 0
  %199 = vmatmul.mubr.bf16.gmra.mrb[0].mxu0 %v145
  %v200 = vpop.f32.mrb[0].mxu0
  %v201 = vadd.f32 0.0, %v200
  %v202 = vpop.f32.mrb[0].mxu0
  %v203 = vadd.f32 0.0, %v202
  %v204 = vpop.f32.mrb[0].mxu0
  %v205 = vadd.f32 0.0, %v204
  %v206 = vpop.f32.mrb[0].mxu0
  %v207 = vadd.f32 0.0, %v206
  %208 = vmatprep.mubr.bf16.mxu0 0
  %209 = vmatmul.mubr.bf16.gmra.mrb[0].mxu0 %v148
  %v210 = vpop.f32.mrb[0].mxu0
  %v211 = vadd.f32 0.0, %v210
  %v212 = vpop.f32.mrb[0].mxu0
  %v213 = vadd.f32 0.0, %v212
  %v214 = vpop.f32.mrb[0].mxu0
  %v215 = vadd.f32 0.0, %v214
  %v216 = vpop.f32.mrb[0].mxu0
  %v217 = vadd.f32 0.0, %v216
  %218 = vmatprep.mubr.bf16.mxu0 0
  %219 = vmatmul.mubr.bf16.gmra.mrb[0].mxu0 %v151
  %v220 = vpop.f32.mrb[0].mxu0
  %v221 = vadd.f32 0.0, %v220
  %v222 = vpop.f32.mrb[0].mxu0
  %v223 = vadd.f32 0.0, %v222
  %v224 = vpop.f32.mrb[0].mxu0
  %v225 = vadd.f32 0.0, %v224
  %v226 = vpop.f32.mrb[0].mxu0
  %v227 = vadd.f32 0.0, %v226
  %228 = vmatprep.mubr.bf16.mxu0 0
  %229 = vmatmul.mubr.bf16.gmra.mrb[0].mxu0 %v154
  %v230 = vpop.f32.mrb[0].mxu0
  %v231 = vadd.f32 0.0, %v230
  %v232 = vpop.f32.mrb[0].mxu0
  %v233 = vadd.f32 0.0, %v232
  %v234 = vpop.f32.mrb[0].mxu0
  %v235 = vpop.f32.mrb[0].mxu0
  %236 = vdwg.mxu0
  %237 = vmatprep.subr.bf16.mxu0 %v111
  %238 = vmatpush1.bf16.msra.mxu0 %v110
  %239 = vmatprep.subr.bf16.mxu0 %v115
  %240 = vmatpush1.bf16.msra.mxu0 %v114
  %241 = vmatprep.subr.bf16.mxu0 %v119
  %242 = vmatpush1.bf16.msra.mxu0 %v118
  %243 = vmatprep.subr.bf16.mxu0 %v123
  %244 = vmatpush1.bf16.msra.mxu0 %v122
  %245 = vmatprep.subr.bf16.mxu0 0
  %246 = vmatpush1.bf16.msra.mxu0 0
  %247 = vmatprep.subr.bf16.mxu0 0
  %248 = vmatpush1.bf16.msra.mxu0 0
  %249 = vmatprep.subr.bf16.mxu0 0
  %250 = vmatpush1.bf16.msra.mxu0 0
  %251 = vmatprep.subr.bf16.mxu0 0
  %252 = vmatpush1.bf16.msra.mxu0 0
  %253 = vmatprep.subr.bf16.mxu0 0
  %254 = vmatpush1.bf16.msra.mxu0 0
  %255 = vmatprep.subr.bf16.mxu0 0
  %256 = vmatpush1.bf16.msra.mxu0 0
  %257 = vmatprep.subr.bf16.mxu0 0
  %258 = vmatpush1.bf16.msra.mxu0 0
  %259 = vmatprep.subr.bf16.mxu0 0
  %260 = vmatpush1.bf16.msra.mxu0 0
  %261 = vmatprep.subr.bf16.mxu0 0
  %262 = vmatpush1.bf16.msra.mxu0 0
  %263 = vmatprep.subr.bf16.mxu0 0
  %264 = vmatpush1.bf16.msra.mxu0 0
  %265 = vmatprep.subr.bf16.mxu0 0
  %266 = vmatpush1.bf16.msra.mxu0 0
  %267 = vmatprep.subr.bf16.mxu0 0
  %268 = vmatpush1.bf16.msra.mxu0 0
  %269 = vmatprep.mubr.bf16.mxu0 0
  %270 = vmatmul.mubr.bf16.gmra.mrb[0].mxu0 %v142
  %v271 = vpop.f32.mrb[0].mxu0
  %v272 = vadd.f32 0.0, %v271
  %v273 = vpop.f32.mrb[0].mxu0
  %v274 = vadd.f32 0.0, %v273
  %v275 = vpop.f32.mrb[0].mxu0
  %v276 = vadd.f32 0.0, %v275
  %v277 = vpop.f32.mrb[0].mxu0
  %v278 = vadd.f32 0.0, %v277
  %279 = vmatprep.mubr.bf16.mxu0 0
  %280 = vmatmul.mubr.bf16.gmra.mrb[0].mxu0 %v145
  %v281 = vpop.f32.mrb[0].mxu0
  %v282 = vadd.f32 0.0, %v281
  %v283 = vpop.f32.mrb[0].mxu0
  %v284 = vadd.f32 0.0, %v283
  %v285 = vpop.f32.mrb[0].mxu0
  %v286 = vadd.f32 0.0, %v285
  %v287 = vpop.f32.mrb[0].mxu0
  %v288 = vadd.f32 0.0, %v287
  %289 = vmatprep.mubr.bf16.mxu0 0
  %290 = vmatmul.mubr.bf16.gmra.mrb[0].mxu0 %v148
  %v291 = vpop.f32.mrb[0].mxu0
  %v292 = vadd.f32 0.0, %v291
  %v293 = vpop.f32.mrb[0].mxu0
  %v294 = vadd.f32 0.0, %v293
  %v295 = vpop.f32.mrb[0].mxu0
  %v296 = vadd.f32 0.0, %v295
  %v297 = vpop.f32.mrb[0].mxu0
  %v298 = vadd.f32 0.0, %v297
  %299 = vmatprep.mubr.bf16.mxu0 0
  %300 = vmatmul.mubr.bf16.gmra.mrb[0].mxu0 %v151
  %v301 = vpop.f32.mrb[0].mxu0
  %v302 = vadd.f32 0.0, %v301
  %v303 = vpop.f32.mrb[0].mxu0
  %v304 = vadd.f32 0.0, %v303
  %v305 = vpop.f32.mrb[0].mxu0
  %v306 = vadd.f32 0.0, %v305
  %v307 = vpop.f32.mrb[0].mxu0
  %v308 = vadd.f32 0.0, %v307
  %309 = vmatprep.mubr.bf16.mxu0 0
  %310 = vmatmul.mubr.bf16.gmra.mrb[0].mxu0 %v154
  %v311 = vpop.f32.mrb[0].mxu0
  %v312 = vadd.f32 0.0, %v311
  %v313 = vpop.f32.mrb[0].mxu0
  %v314 = vadd.f32 0.0, %v313
  %v315 = vpop.f32.mrb[0].mxu0
  %v316 = vpop.f32.mrb[0].mxu0
  %317 = vdwg.mxu0
  %318 = vst [vmem:[%s2] sm:$0xff] %v191
  %319 = vst [vmem:[%s2 + $0x8] sm:$0xff] %v193
  %320 = vst [vmem:[%s2 + $0x10] sm:$0xff] %v272
  %321 = vst [vmem:[%s2 + $0x18] sm:$0xff] %v274
  %322 = vst [vmem:[%s2 + $0x20] sm:$0xff] %v195
  %323 = vst [vmem:[%s2 + $0x28] sm:$0xff] %v197
  %324 = vst [vmem:[%s2 + $0x30] sm:$0xff] %v276
  %325 = vst [vmem:[%s2 + $0x38] sm:$0xff] %v278
  %326 = vst [vmem:[%s2 + $0x40] sm:$0xff] %v201
  %327 = vst [vmem:[%s2 + $0x48] sm:$0xff] %v203
  %328 = vst [vmem:[%s2 + $0x50] sm:$0xff] %v282
  %329 = vst [vmem:[%s2 + $0x58] sm:$0xff] %v284
  %330 = vst [vmem:[%s2 + $0x60] sm:$0xff] %v205
  %331 = vst [vmem:[%s2 + $0x68] sm:$0xff] %v207
  %332 = vst [vmem:[%s2 + $0x70] sm:$0xff] %v286
  %333 = vst [vmem:[%s2 + $0x78] sm:$0xff] %v288
  %334 = vst [vmem:[%s2 + $0x80] sm:$0xff] %v211
  %335 = vst [vmem:[%s2 + $0x88] sm:$0xff] %v213
  %336 = vst [vmem:[%s2 + $0x90] sm:$0xff] %v292
  %337 = vst [vmem:[%s2 + $0x98] sm:$0xff] %v294
  %338 = vst [vmem:[%s2 + $0xa0] sm:$0xff] %v215
  %339 = vst [vmem:[%s2 + $0xa8] sm:$0xff] %v217
  %340 = vst [vmem:[%s2 + $0xb0] sm:$0xff] %v296
  %341 = vst [vmem:[%s2 + $0xb8] sm:$0xff] %v298
  %342 = vst [vmem:[%s2 + $0xc0] sm:$0xff] %v221
  %343 = vst [vmem:[%s2 + $0xc8] sm:$0xff] %v223
  %344 = vst [vmem:[%s2 + $0xd0] sm:$0xff] %v302
  %345 = vst [vmem:[%s2 + $0xd8] sm:$0xff] %v304
  %346 = vst [vmem:[%s2 + $0xe0] sm:$0xff] %v225
  %347 = vst [vmem:[%s2 + $0xe8] sm:$0xff] %v227
  %348 = vst [vmem:[%s2 + $0xf0] sm:$0xff] %v306
  %349 = vst [vmem:[%s2 + $0xf8] sm:$0xff] %v308
  %350 = vst [vmem:[%s2 + $0x100] sm:$0xff] %v231
  %351 = vst [vmem:[%s2 + $0x108] sm:$0xff] %v233
  %352 = vst [vmem:[%s2 + $0x110] sm:$0xff] %v312
  %353 = vst [vmem:[%s2 + $0x118] sm:$0xff] %v314
  // Predicated region
  $region10: #{_stft_core.1} parent=0 // pred_check
    _
  $region11: #{_stft_core.1} parent=0 // pred_check_branch
    %355 = sbr.rel (0) target = $region13
  $region12: #{_stft_core.1} parent=0 // pred_region
    _
  $region13: #{_stft_core.1} parent=0 // pred_fallthru
    _
  // Predicated region
  $region14: #{_stft_core.1} parent=0 // pred_check
    _
  $region15: #{_stft_core.1} parent=0 // pred_check_branch
    %357 = sbr.rel (0) target = $region17
  $region16: #{_stft_core.1} parent=0 // pred_region
    _
  $region17: #{_stft_core.1} parent=0 // pred_fallthru
    _

</llo_original>
